<compile_context>
chip_gen: v7x
topology: tpu7x:2x2x1
jax: 0.10.0
libtpu: 0.0.40
codegen_flags: <defaults>
</compile_context>

<pallas_src>
import numpy as np
import jax
import jax.numpy as jnp
from jax.experimental import pallas as pl
from jax.experimental.pallas import tpu as pltpu

EPS = 1e-5
KSIZE = 5


def _round_up(x, m):
    return (x + m - 1) // m * m


def _pick_time_tile(t_pad):
    # t_pad is a multiple of 8, so this always returns a multiple of 4.
    for t in (64, 32, 16, 8):
        if t_pad % t == 0:
            return t
    return 8


def _vmem_limit_bytes():
    # Per-generation budget: v7x has 64 MiB physical VMEM, v5e/v6e 128 MiB.
    try:
        cap = pltpu.get_tpu_info().vmem_capacity_bytes
    except Exception:
        cap = 64 * 1024 * 1024
    return int(min(cap * 0.7, 100 * 1024 * 1024))


# ---------------------------------------------------------------------------
# Kernel 1: Conv1d(k=5, pad=2) + folded eval-BatchNorm + fused LSTM input
#           projection for BOTH directions, row-tiled over time.
# ---------------------------------------------------------------------------
def conv_bn_proj_kernel(x_ref, wconv_ref, bconv_ref, wcat_ref, bcat_ref, g_ref):
    # x_ref    : ((Tt+K-1)*Bp, E) bf16  halo'd window, row r = t_local*Bp + b
    # wconv_ref: (K, E, H)        bf16  conv weight with BN scale folded in
    # bconv_ref: (1, H)           f32   conv_bias*bn_scale + bn_shift
    # wcat_ref : (H, 8H)          bf16  [W_ih_fwd | W_ih_bwd] (transposed)
    # bcat_ref : (1, 8H)          f32   [b_ih+b_hh fwd | b_ih+b_hh bwd]
    # g_ref    : (Tt*Bp, 8H)      bf16  gate pre-activations (everything but h@W_hh)
    K = wconv_ref.shape[0]
    H = wconv_ref.shape[2]
    R = g_ref.shape[0]                       # Tt * Bp rows in this tile
    Bp = (x_ref.shape[0] - R) // (K - 1)     # padded batch (multiple of 8)

    # K shifted taps over the halo'd window: shift = k*Bp rows (sublane-aligned).
    acc = jnp.zeros((R, H), jnp.float32)
    for k in range(K):                       # static unroll -> K MXU matmuls
        acc = acc + jnp.dot(x_ref[pl.ds(k * Bp, R), :], wconv_ref[k],
                            preferred_element_type=jnp.float32)
    # Conv bias + folded eval-mode BatchNorm; Dropout (eval) = identity.
    y = (acc + bconv_ref[...]).astype(jnp.bfloat16)

    # Hoisted LSTM input projection for both directions in ONE (R,H)@(H,8H) matmul.
    g = jnp.dot(y, wcat_ref[...], preferred_element_type=jnp.float32) + bcat_ref[...]
    g_ref[...] = g.astype(jnp.bfloat16)


def conv_bn_proj(x_tiles, w_conv, b_conv, w_cat, b_cat, Bp, Tt):
    n_t, R_in, E = x_tiles.shape
    K, _, H = w_conv.shape
    H8 = w_cat.shape[1]
    R = Tt * Bp
    T_rows = n_t * R

    flops = 2 * T_rows * E * H * K + 2 * T_rows * H * H8
    bytes_acc = (x_tiles.size * 2 + T_rows * H8 * 2 + w_conv.size * 2
                 + w_cat.size * 2 + b_conv.size * 4 + b_cat.size * 4)

    return pl.pallas_call(
        conv_bn_proj_kernel,
        out_shape=jax.ShapeDtypeStruct((T_rows, H8), jnp.bfloat16),
        grid=(n_t,),
        in_specs=[
            pl.BlockSpec((None, R_in, E), lambda i: (i, 0, 0)),   # halo'd conv window
            pl.BlockSpec((K, E, H), lambda i: (0, 0, 0)),         # conv weight (resident)
            pl.BlockSpec((1, H), lambda i: (0, 0)),               # folded bias
            pl.BlockSpec((H, H8), lambda i: (0, 0)),              # fused W_ih (resident)
            pl.BlockSpec((1, H8), lambda i: (0, 0)),              # fused bias
        ],
        out_specs=pl.BlockSpec((R, H8), lambda i: (i, 0)),
        compiler_params=pltpu.CompilerParams(
            dimension_semantics=("parallel",),
            vmem_limit_bytes=_vmem_limit_bytes()),
        cost_estimate=pl.CostEstimate(flops=int(flops), transcendentals=0,
                                      bytes_accessed=int(bytes_acc)),
    )(x_tiles, w_conv, b_conv, w_cat, b_cat)


# ---------------------------------------------------------------------------
# Kernel 2: bidirectional LSTM recurrence, time-chunked, one direction per
#           "parallel" grid slot (v7x megacore splits by direction).
# ---------------------------------------------------------------------------
def bilstm_kernel(len_ref, g_ref, whh_ref, o_ref, h_ref, c_ref):
    # len_ref : (Bp, 1)       int32  lengths (0 for padded batch rows)
    # g_ref   : (Ct, Bp, 4H)  bf16   this direction's gate inputs, this chunk
    # whh_ref : (H, 4H)       bf16   this direction's recurrent weight
    # o_ref   : (Ct, Bp, H)   f32    this direction's hidden outputs, this chunk
    # h_ref/c_ref : (2, Bp, H) f32   per-direction carry across chunks (scratch)
    d = pl.program_id(0)                     # 0 = forward, 1 = backward
    c = pl.program_id(1)                     # chunk index (in processing order)
    nc = pl.num_programs(1)
    Ct, Bp, H4 = g_ref.shape
    H = H4 // 4

    @pl.when(c == 0)                         # fresh zero state per direction
    def _():
        h_ref[d] = jnp.zeros((Bp, H), jnp.float32)
        c_ref[d] = jnp.zeros((Bp, H), jnp.float32)

    whh = whh_ref[...]                       # hoisted: resident across the chunk
    seq_len = len_ref[...]                   # (Bp, 1) int32
    bwd_f = (d == 1).astype(jnp.float32)     # scalar 0./1.
    # global time of local chunk index 0 (chunk order is reversed for backward)
    t_base = ((1 - d) * c + d * (nc - 1 - c)) * Ct

    def cell(l, h, cc):
        # z = (x@W_ih + b) [precomputed bf16] + h@W_hh  — only this dot is serial.
        z = g_ref[l].astype(jnp.float32) + jnp.dot(
            h.astype(jnp.bfloat16), whh, preferred_element_type=jnp.float32)
        i = jax.nn.sigmoid(z[:, 0:H])        # PyTorch gate order i, f, g, o
        f = jax.nn.sigmoid(z[:, H:2 * H])
        gg = jnp.tanh(z[:, 2 * H:3 * H])
        o = jax.nn.sigmoid(z[:, 3 * H:4 * H])
        c_new = f * cc + i * gg
        h_new = o * jnp.tanh(c_new)
        m = (t_base + l < seq_len).astype(jnp.float32)   # (Bp,1) valid-step mask
        # pack/pad_packed semantics: padded outputs are zero.  Forward lets h/c run
        # through padded steps (h_n/c_n are never returned by the module); backward
        # holds h/c at zero until t < length, i.e. the reverse scan effectively
        # starts from a zero state at t = length-1.  Padded positions are finite
        # (zero-embedding pad token), so 0*value stays 0.
        o_ref[l] = h_new * m
        carry_m = 1.0 - bwd_f * (1.0 - m)    # fwd: 1, bwd: m
        return h_new * carry_m, c_new * carry_m

    UNROLL = 4                               # Ct is a multiple of 8 by construction

    def body(s, carry):
        h, cc = carry
        for u in range(UNROLL):              # 4 steps per trip for latency hiding
            j = s * UNROLL + u
            l = (1 - d) * j + d * (Ct - 1 - j)   # fwd: ascending, bwd: descending
            h, cc = cell(l, h, cc)
        return h, cc

    h_fin, c_fin = jax.lax.fori_loop(0, Ct // UNROLL, body, (h_ref[d], c_ref[d]))
    h_ref[d] = h_fin
    c_ref[d] = c_fin


def bilstm(g3, lengths_col, whh_stack, Ct):
    T_pad, Bp, H8 = g3.shape
    H4 = H8 // 2
    H = H4 // 4
    nch = T_pad // Ct

    flops = 2 * 2 * T_pad * Bp * H * H4 + 12 * 2 * T_pad * Bp * H
    trans = 5 * 2 * T_pad * Bp * H
    bytes_acc = g3.size * 2 + 2 * T_pad * Bp * H * 4 + whh_stack.size * 2 + Bp * 4

    def g_map(d, c):      # direction d picks the fwd/bwd 4H channel block; bwd
        return ((1 - d) * c + d * (nch - 1 - c), 0, d)   # chunks stream in reverse

    def o_map(d, c):
        return (d, (1 - d) * c + d * (nch - 1 - c), 0, 0)

    return pl.pallas_call(
        bilstm_kernel,
        out_shape=jax.ShapeDtypeStruct((2, T_pad, Bp, H), jnp.float32),
        grid=(2, nch),
        in_specs=[
            pl.BlockSpec((Bp, 1), lambda d, c: (0, 0)),           # lengths
            pl.BlockSpec((Ct, Bp, H4), g_map),                    # gate-input chunk
            pl.BlockSpec((None, H, H4), lambda d, c: (d, 0, 0)),  # W_hh (per dir)
        ],
        out_specs=pl.BlockSpec((None, Ct, Bp, H), o_map),
        scratch_shapes=[pltpu.VMEM((2, Bp, H), jnp.float32),      # h carry
                        pltpu.VMEM((2, Bp, H), jnp.float32)],     # c carry
        compiler_params=pltpu.CompilerParams(
            dimension_semantics=("parallel", "arbitrary"),
            vmem_limit_bytes=_vmem_limit_bytes()),
        cost_estimate=pl.CostEstimate(flops=int(flops), transcendentals=int(trans),
                                      bytes_accessed=int(bytes_acc)),
    )(lengths_col, g3, whh_stack)


# ---------------------------------------------------------------------------
# Full TextEncoder forward (eval mode)
# ---------------------------------------------------------------------------
def text_encoder_forward(tokens, lengths_np, params):
    B, T = tokens.shape
    vocab_size, E = params["emb"].shape
    H = params["bn_gamma"].shape[0]
    K = params["conv_w"].shape[2]            # PyTorch Conv1d weight is (H, E, K)

    Bp = _round_up(B, 8)                     # sublane-aligned tap offsets / reshapes
    T_pad = _round_up(T, 8)
    Tt = _pick_time_tile(T_pad)              # conv time-tile
    Ct = _pick_time_tile(T_pad)              # LSTM time-chunk
    n_t = T_pad // Tt
    assert T_pad % Ct == 0 and Ct % 4 == 0 and 4 * H % 32 == 0

    f32, bf16 = jnp.float32, jnp.bfloat16

    # ---- fold eval-mode BatchNorm1d into the conv; transpose PyTorch layouts ----
    scale = params["bn_gamma"] / jnp.sqrt(params["bn_var"] + EPS)            # (H,)
    w_conv = (jnp.transpose(params["conv_w"], (2, 1, 0)) * scale).astype(bf16)  # (K,E,H)
    b_conv = ((params["conv_b"] - params["bn_mean"]) * scale
              + params["bn_beta"]).reshape(1, H).astype(f32)

    # ---- LSTM weights: PyTorch (4H, in) -> (in, 4H); fuse fwd|bwd projections ----
    w_cat = jnp.concatenate([params["w_ih_f"].T, params["w_ih_b"].T],
                            axis=1).astype(bf16)                              # (H, 8H)
    b_cat = jnp.concatenate([params["b_ih_f"] + params["b_hh_f"],
                             params["b_ih_b"] + params["b_hh_b"]]
                            ).reshape(1, 8 * H).astype(f32)
    whh_stack = jnp.stack([params["w_hh_f"].T, params["w_hh_b"].T]).astype(bf16)  # (2,H,4H)

    # ---- pad tokens/lengths; pad index == vocab_size maps to an all-zero row ----
    tok_pad = jnp.full((Bp, T_pad), vocab_size, jnp.int32)
    tok_pad = tok_pad.at[:B, :T].set(tokens.astype(jnp.int32))
    lengths_p = np.zeros((Bp,), np.int32)
    lengths_p[:B] = np.asarray(lengths_np, np.int32)
    lengths_col = jnp.asarray(lengths_p).reshape(Bp, 1)

    # ---- embedding gather straight into halo'd, time-major-flattened conv tiles
    # (no in-kernel zero-fill or xpad copy; OOB times hit the appended zero row) ----
    emb_ext = jnp.concatenate([params["emb"], jnp.zeros((1, E), f32)],
                              axis=0).astype(bf16)                            # (V+1, E)
    halo = K // 2
    t_idx = jnp.arange(n_t)[:, None] * Tt + (jnp.arange(Tt + K - 1)[None, :] - halo)
    valid = (t_idx >= 0) & (t_idx < T_pad)
    t_idx_c = jnp.clip(t_idx, 0, T_pad - 1)
    tok_tm = tok_pad.T                                                        # (T_pad, Bp)
    tok_win = jnp.where(valid[..., None], tok_tm[t_idx_c], vocab_size)        # (n_t,Tt+4,Bp)
    tok_rows = tok_win.reshape(n_t, (Tt + K - 1) * Bp)
    x_tiles = jnp.take(emb_ext, tok_rows, axis=0)            # (n_t, (Tt+4)*Bp, E) bf16

    # ---- Kernel 1: row-tiled conv + BN + fused (fwd|bwd) LSTM input projection ----
    g_flat = conv_bn_proj(x_tiles, w_conv, b_conv, w_cat, b_cat, Bp, Tt)  # (T_pad*Bp, 8H)
    g3 = g_flat.reshape(T_pad, Bp, 8 * H)                    # free row-major reshape

    # ---- Kernel 2: time-chunked bidirectional recurrence ----
    out4 = bilstm(g3, lengths_col, whh_stack, Ct)            # (2, T_pad, Bp, H) f32

    # ---- single layout copy to batch_first with [fwd | bwd] on channels ----
    out = jnp.transpose(out4, (2, 1, 0, 3)).reshape(Bp, T_pad, 2 * H)
    # pad_packed_sequence truncates to max(lengths); padded positions are already 0.
    t_max = int(np.max(lengths_np))   # host-side (would retrace per max length if jitted)
    return out[:B, :t_max, :]


if __name__ == "__main__":
    vocab_size, E, H = 24, 32, 32
    B, T, K = 2, 16, KSIZE
    lengths = np.array([16, 11], dtype=np.int32)

    key = jax.random.PRNGKey(0)
    ks = jax.random.split(key, 16)
    f32 = jnp.float32

    # Parameters stored in the PyTorch layouts; the wrapper performs the transposes.
    params = {
        "emb": 0.1 * jax.random.normal(ks[0], (vocab_size, E), f32),
        "conv_w": 0.1 * jax.random.normal(ks[1], (H, E, K), f32),     # Conv1d.weight
        "conv_b": 0.1 * jax.random.normal(ks[2], (H,), f32),
        "bn_gamma": 1.0 + 0.1 * jax.random.normal(ks[3], (H,), f32),
        "bn_beta": 0.1 * jax.random.normal(ks[4], (H,), f32),
        "bn_mean": jnp.zeros((H,), f32),                              # running stats
        "bn_var": jnp.ones((H,), f32),
        "w_ih_f": 0.1 * jax.random.normal(ks[5], (4 * H, H), f32),    # weight_ih_l0
        "w_hh_f": 0.1 * jax.random.normal(ks[6], (4 * H, H), f32),    # weight_hh_l0
        "b_ih_f": 0.1 * jax.random.normal(ks[7], (4 * H,), f32),
        "b_hh_f": 0.1 * jax.random.normal(ks[8], (4 * H,), f32),
        "w_ih_b": 0.1 * jax.random.normal(ks[9], (4 * H, H), f32),    # *_l0_reverse
        "w_hh_b": 0.1 * jax.random.normal(ks[10], (4 * H, H), f32),
        "b_ih_b": 0.1 * jax.random.normal(ks[11], (4 * H,), f32),
        "b_hh_b": 0.1 * jax.random.normal(ks[12], (4 * H,), f32),
    }

    tokens = jax.random.randint(ks[13], (B, T), 0, vocab_size, dtype=jnp.int32)

    out = text_encoder_forward(tokens, lengths, params)
    out = jax.block_until_ready(out)
    assert out.shape == (B, int(lengths.max()), 2 * H), out.shape
    assert bool(jnp.all(jnp.isfinite(out)))
    print("KERNEL_OK")
</pallas_src>

<mosaic_0001>
module attributes {stable_mosaic.version = 11 : i64} {
  func.func @conv_bn_proj_kernel(%arg0: i32, %arg1: memref<1x160x32xbf16, #tpu.memory_space<vmem>>, %arg2: memref<5x32x32xbf16, #tpu.memory_space<vmem>>, %arg3: memref<1x32xf32, #tpu.memory_space<vmem>>, %arg4: memref<32x256xbf16, #tpu.memory_space<vmem>>, %arg5: memref<1x256xf32, #tpu.memory_space<vmem>>, %arg6: memref<128x256xbf16, #tpu.memory_space<vmem>>) attributes {dimension_semantics = [#tpu.dimension_semantics<parallel>], iteration_bounds = array<i64: 1>, scalar_prefetch = 0 : i64, scratch_operands = 0 : i64, tpu.core_type = #tpu.core_type<tc>, window_params = [{transform_indices = @transform_0, window_bounds = array<i64: 1, 160, 32>}, {pipeline_mode = #tpu.pipeline_mode<synchronous>, transform_indices = @transform_1, window_bounds = array<i64: 5, 32, 32>}, {pipeline_mode = #tpu.pipeline_mode<synchronous>, transform_indices = @transform_2, window_bounds = array<i64: 1, 32>}, {pipeline_mode = #tpu.pipeline_mode<synchronous>, transform_indices = @transform_3, window_bounds = array<i64: 32, 256>}, {pipeline_mode = #tpu.pipeline_mode<synchronous>, transform_indices = @transform_4, window_bounds = array<i64: 1, 256>}, {transform_indices = @transform_5, window_bounds = array<i64: 128, 256>}]} {
    %cst = arith.constant 0.000000e+00 : f32
    %0 = vector.broadcast %cst : f32 to vector<128x32xf32>
    %c0 = arith.constant 0 : index
    %c0_0 = arith.constant 0 : index
    %c0_1 = arith.constant 0 : index
    %1 = vector.load %arg1[%c0, %c0_0, %c0_1] : memref<1x160x32xbf16, #tpu.memory_space<vmem>>, vector<1x128x32xbf16>
    %2 = vector.shape_cast %1 : vector<1x128x32xbf16> to vector<128x32xbf16>
    %c0_2 = arith.constant 0 : index
    %c0_3 = arith.constant 0 : index
    %c0_4 = arith.constant 0 : index
    %3 = vector.load %arg2[%c0_2, %c0_3, %c0_4] : memref<5x32x32xbf16, #tpu.memory_space<vmem>>, vector<1x32x32xbf16>
    %4 = vector.shape_cast %3 : vector<1x32x32xbf16> to vector<32x32xbf16>
    %cst_5 = arith.constant dense<0.000000e+00> : vector<128x32xf32>
    %5 = tpu.matmul %2, %4, %cst_5 {dimension_numbers = #tpu.dot_dimension_numbers<[1], [0], [0], [1], [0, 0, 1, 1], [], []>} : vector<128x32xbf16>, vector<32x32xbf16>, vector<128x32xf32> -> vector<128x32xf32>
    %6 = arith.addf %0, %5 : vector<128x32xf32>
    %c0_6 = arith.constant 0 : index
    %c8 = arith.constant 8 : index
    %c0_7 = arith.constant 0 : index
    %7 = vector.load %arg1[%c0_6, %c8, %c0_7] : memref<1x160x32xbf16, #tpu.memory_space<vmem>>, vector<1x128x32xbf16>
    %8 = vector.shape_cast %7 : vector<1x128x32xbf16> to vector<128x32xbf16>
    %c1 = arith.constant 1 : index
    %c0_8 = arith.constant 0 : index
    %c0_9 = arith.constant 0 : index
    %9 = vector.load %arg2[%c1, %c0_8, %c0_9] : memref<5x32x32xbf16, #tpu.memory_space<vmem>>, vector<1x32x32xbf16>
    %10 = vector.shape_cast %9 : vector<1x32x32xbf16> to vector<32x32xbf16>
    %cst_10 = arith.constant dense<0.000000e+00> : vector<128x32xf32>
    %11 = tpu.matmul %8, %10, %cst_10 {dimension_numbers = #tpu.dot_dimension_numbers<[1], [0], [0], [1], [0, 0, 1, 1], [], []>} : vector<128x32xbf16>, vector<32x32xbf16>, vector<128x32xf32> -> vector<128x32xf32>
    %12 = arith.addf %6, %11 : vector<128x32xf32>
    %c0_11 = arith.constant 0 : index
    %c16 = arith.constant 16 : index
    %c0_12 = arith.constant 0 : index
    %13 = vector.load %arg1[%c0_11, %c16, %c0_12] : memref<1x160x32xbf16, #tpu.memory_space<vmem>>, vector<1x128x32xbf16>
    %14 = vector.shape_cast %13 : vector<1x128x32xbf16> to vector<128x32xbf16>
    %c2 = arith.constant 2 : index
    %c0_13 = arith.constant 0 : index
    %c0_14 = arith.constant 0 : index
    %15 = vector.load %arg2[%c2, %c0_13, %c0_14] : memref<5x32x32xbf16, #tpu.memory_space<vmem>>, vector<1x32x32xbf16>
    %16 = vector.shape_cast %15 : vector<1x32x32xbf16> to vector<32x32xbf16>
    %cst_15 = arith.constant dense<0.000000e+00> : vector<128x32xf32>
    %17 = tpu.matmul %14, %16, %cst_15 {dimension_numbers = #tpu.dot_dimension_numbers<[1], [0], [0], [1], [0, 0, 1, 1], [], []>} : vector<128x32xbf16>, vector<32x32xbf16>, vector<128x32xf32> -> vector<128x32xf32>
    %18 = arith.addf %12, %17 : vector<128x32xf32>
    %c0_16 = arith.constant 0 : index
    %c24 = arith.constant 24 : index
    %c0_17 = arith.constant 0 : index
    %19 = vector.load %arg1[%c0_16, %c24, %c0_17] : memref<1x160x32xbf16, #tpu.memory_space<vmem>>, vector<1x128x32xbf16>
    %20 = vector.shape_cast %19 : vector<1x128x32xbf16> to vector<128x32xbf16>
    %c3 = arith.constant 3 : index
    %c0_18 = arith.constant 0 : index
    %c0_19 = arith.constant 0 : index
    %21 = vector.load %arg2[%c3, %c0_18, %c0_19] : memref<5x32x32xbf16, #tpu.memory_space<vmem>>, vector<1x32x32xbf16>
    %22 = vector.shape_cast %21 : vector<1x32x32xbf16> to vector<32x32xbf16>
    %cst_20 = arith.constant dense<0.000000e+00> : vector<128x32xf32>
    %23 = tpu.matmul %20, %22, %cst_20 {dimension_numbers = #tpu.dot_dimension_numbers<[1], [0], [0], [1], [0, 0, 1, 1], [], []>} : vector<128x32xbf16>, vector<32x32xbf16>, vector<128x32xf32> -> vector<128x32xf32>
    %24 = arith.addf %18, %23 : vector<128x32xf32>
    %c0_21 = arith.constant 0 : index
    %c32 = arith.constant 32 : index
    %c0_22 = arith.constant 0 : index
    %25 = vector.load %arg1[%c0_21, %c32, %c0_22] : memref<1x160x32xbf16, #tpu.memory_space<vmem>>, vector<1x128x32xbf16>
    %26 = vector.shape_cast %25 : vector<1x128x32xbf16> to vector<128x32xbf16>
    %c4 = arith.constant 4 : index
    %c0_23 = arith.constant 0 : index
    %c0_24 = arith.constant 0 : index
    %27 = vector.load %arg2[%c4, %c0_23, %c0_24] : memref<5x32x32xbf16, #tpu.memory_space<vmem>>, vector<1x32x32xbf16>
    %28 = vector.shape_cast %27 : vector<1x32x32xbf16> to vector<32x32xbf16>
    %cst_25 = arith.constant dense<0.000000e+00> : vector<128x32xf32>
    %29 = tpu.matmul %26, %28, %cst_25 {dimension_numbers = #tpu.dot_dimension_numbers<[1], [0], [0], [1], [0, 0, 1, 1], [], []>} : vector<128x32xbf16>, vector<32x32xbf16>, vector<128x32xf32> -> vector<128x32xf32>
    %30 = arith.addf %24, %29 : vector<128x32xf32>
    %c0_26 = arith.constant 0 : index
    %c0_27 = arith.constant 0 : index
    %31 = vector.load %arg3[%c0_26, %c0_27] : memref<1x32xf32, #tpu.memory_space<vmem>>, vector<1x32xf32>
    %32 = vector.broadcast %31 : vector<1x32xf32> to vector<128x32xf32>
    %33 = arith.addf %30, %32 : vector<128x32xf32>
    %34 = arith.truncf %33 : vector<128x32xf32> to vector<128x32xbf16>
    %c0_28 = arith.constant 0 : index
    %c0_29 = arith.constant 0 : index
    %35 = vector.load %arg4[%c0_28, %c0_29] : memref<32x256xbf16, #tpu.memory_space<vmem>>, vector<32x256xbf16>
    %cst_30 = arith.constant dense<0.000000e+00> : vector<128x256xf32>
    %36 = tpu.matmul %34, %35, %cst_30 {dimension_numbers = #tpu.dot_dimension_numbers<[1], [0], [0], [1], [0, 0, 1, 1], [], []>} : vector<128x32xbf16>, vector<32x256xbf16>, vector<128x256xf32> -> vector<128x256xf32>
    %c0_31 = arith.constant 0 : index
    %c0_32 = arith.constant 0 : index
    %37 = vector.load %arg5[%c0_31, %c0_32] : memref<1x256xf32, #tpu.memory_space<vmem>>, vector<1x256xf32>
    %38 = vector.broadcast %37 : vector<1x256xf32> to vector<128x256xf32>
    %39 = arith.addf %36, %38 : vector<128x256xf32>
    %40 = arith.truncf %39 : vector<128x256xf32> to vector<128x256xbf16>
    %c0_33 = arith.constant 0 : index
    %c0_34 = arith.constant 0 : index
    %41 = vector.load %arg6[%c0_33, %c0_34] : memref<128x256xbf16, #tpu.memory_space<vmem>>, vector<128x256xbf16>
    tpu.vector_store %arg6[%c0_33, %c0_34], %40 {strides = array<i32>} : memref<128x256xbf16, #tpu.memory_space<vmem>>, vector<128x256xbf16>,
    return
  }
  func.func @transform_0(%arg0: i32) -> (i32, i32, i32) {
    %c0_i32 = arith.constant 0 : i32
    %c0_i32_0 = arith.constant 0 : i32
    %c0_i32_1 = arith.constant 0 : i32
    return %arg0, %c0_i32, %c0_i32_0 : i32, i32, i32
  }
  func.func @transform_1(%arg0: i32) -> (i32, i32, i32) {
    %c0_i32 = arith.constant 0 : i32
    %c0_i32_0 = arith.constant 0 : i32
    %c0_i32_1 = arith.constant 0 : i32
    %c0_i32_2 = arith.constant 0 : i32
    return %c0_i32, %c0_i32_0, %c0_i32_1 : i32, i32, i32
  }
  func.func @transform_2(%arg0: i32) -> (i32, i32) {
    %c0_i32 = arith.constant 0 : i32
    %c0_i32_0 = arith.constant 0 : i32
    %c0_i32_1 = arith.constant 0 : i32
    return %c0_i32, %c0_i32_0 : i32, i32
  }
  func.func @transform_3(%arg0: i32) -> (i32, i32) {
    %c0_i32 = arith.constant 0 : i32
    %c0_i32_0 = arith.constant 0 : i32
    %c0_i32_1 = arith.constant 0 : i32
    return %c0_i32, %c0_i32_0 : i32, i32
  }
  func.func @transform_4(%arg0: i32) -> (i32, i32) {
    %c0_i32 = arith.constant 0 : i32
    %c0_i32_0 = arith.constant 0 : i32
    %c0_i32_1 = arith.constant 0 : i32
    return %c0_i32, %c0_i32_0 : i32, i32
  }
  func.func @transform_5(%arg0: i32) -> (i32, i32) {
    %c0_i32 = arith.constant 0 : i32
    %c0_i32_0 = arith.constant 0 : i32
    return %arg0, %c0_i32 : i32, i32
  }
}

</mosaic_0001>

<llo_original>
// kernel: tpu_custom_call.1
$region0: #{tpu_custom_call.1}
  #allocation0 [shape = 'u32[]', space=smem, size = 0x4, offset = 0x4, fixed_abs, tag = 'smem constant byte address 0x4 - core index']
  #allocation1 [shape = 'u32[144,128]{1,0:T(1,128)}', space=vmem, size = 0x12000, scoped, tag = 'internal scratch']
  %s0 = inlined_call_operand.vmem [shape: bf16[1,160,32], index: 0, kind: input, shape index: {}]
  %s1 = inlined_call_operand.vmem [shape: bf16[5,32,32], index: 1, kind: input, shape index: {}]
  %s2 = inlined_call_operand.vmem [shape: f32[1,32], index: 2, kind: input, shape index: {}]
  %s3 = inlined_call_operand.vmem [shape: bf16[32,256], index: 3, kind: input, shape index: {}]
  %s4 = inlined_call_operand.vmem [shape: f32[1,256], index: 4, kind: input, shape index: {}]
  %s5 = inlined_call_operand.hbm [shape: bf16[128,256], index: 5, kind: output, shape index: {}]
  %s6 = sld [smem:[#allocation0]]
  $region30: #{tpu_custom_call.1} parent=0
    _
  %s8 = ssub.s32 1, %s6
  %s9 = scalar_select 0, %s8, %s6
  $region1: #{tpu_custom_call.1} parent=0
    #allocation2 [shape = 'u8[65536]{0}', space=vmem, size = 0x10000, scoped, tag = 'output window, operand 0, single buffered']
    #allocation3 [shape = 's32[1]{0}', space=sflag, size = 0x4, scoped, tag = 'scoped memory for tpu_custom_call.1']
    %10 = vsyncpa [#allocation3], 0
    // Predicated region
    $region2: #{tpu_custom_call.1} parent=1 // pred_check
      _
    $region3: #{tpu_custom_call.1} parent=1 // pred_check_branch
      %12 = sbr.rel (0) target = $region5
    $region4: #{tpu_custom_call.1} parent=1 // pred_region
      _
    $region5: #{tpu_custom_call.1} parent=1 // pred_fallthru
      _
    // Predicated region
    $region6: #{tpu_custom_call.1} parent=1 // pred_check
      _
    $region7: #{tpu_custom_call.1} parent=1 // pred_check_branch
      %14 = sbr.rel (0) target = $region9
    $region8: #{tpu_custom_call.1} parent=1 // pred_region
      _
    $region9: #{tpu_custom_call.1} parent=1 // pred_fallthru
      _
    // Predicated region
    $region10: #{tpu_custom_call.1} parent=1 // pred_check
      _
    $region11: #{tpu_custom_call.1} parent=1 // pred_check_branch
      %16 = sbr.rel (0) target = $region13
    $region12: #{tpu_custom_call.1} parent=1 // pred_region
      _
    $region13: #{tpu_custom_call.1} parent=1 // pred_fallthru
      _
    // Predicated region
    $region14: #{tpu_custom_call.1} parent=1 // pred_check
      _
    $region15: #{tpu_custom_call.1} parent=1 // pred_check_branch
      %18 = sbr.rel (0) target = $region17
    $region16: #{tpu_custom_call.1} parent=1 // pred_region
      _
    $region17: #{tpu_custom_call.1} parent=1 // pred_fallthru
      _
    // Predicated region
    $region18: #{tpu_custom_call.1} parent=1 // pred_check
      _
    $region19: #{tpu_custom_call.1} parent=1 // pred_check_branch
      %20 = sbr.rel (0) target = $region21
    $region20: #{tpu_custom_call.1} parent=1 // pred_region
      _
    $region21: #{tpu_custom_call.1} parent=1 // pred_fallthru
      _
    %v22 = vld [vmem:[%s0] sm:$0xf]
    %v23 = vld [vmem:[%s0 + $0x4] sm:$0xf]
    %v24 = vld [vmem:[%s0 + $0x8] sm:$0xf]
    %v25 = vld [vmem:[%s0 + $0xc] sm:$0xf]
    %v26 = vld [vmem:[%s0 + $0x10] sm:$0xf]
    %v27 = vld [vmem:[%s0 + $0x14] sm:$0xf]
    %v28 = vld [vmem:[%s0 + $0x18] sm:$0xf]
    %v29 = vld [vmem:[%s0 + $0x1c] sm:$0xf]
    %v30 = vld [vmem:[%s0 + $0x20] sm:$0xf]
    %v31 = vld [vmem:[%s0 + $0x24] sm:$0xf]
    %v32 = vld [vmem:[%s0 + $0x28] sm:$0xf]
    %v33 = vld [vmem:[%s0 + $0x2c] sm:$0xf]
    %v34 = vld [vmem:[%s0 + $0x30] sm:$0xf]
    %v35 = vld [vmem:[%s0 + $0x34] sm:$0xf]
    %v36 = vld [vmem:[%s0 + $0x38] sm:$0xf]
    %v37 = vld [vmem:[%s0 + $0x3c] sm:$0xf]
    %v38 = vld [vmem:[%s1] sm:$0xf]
    %v39 = vld [vmem:[%s1 + $0x4] sm:$0xf]
    %v40 = vld [vmem:[%s1 + $0x8] sm:$0xf]
    %v41 = vld [vmem:[%s1 + $0xc] sm:$0xf]
    %v42 = vld [vmem:[%s0 + $0x40] sm:$0xf]
    %s43 = scalar_lea.vmem %s1, 16
    %v44 = vld [vmem:[%s43] sm:$0xf]
    %v45 = vld [vmem:[%s43 + $0x4] sm:$0xf]
    %v46 = vld [vmem:[%s43 + $0x8] sm:$0xf]
    %v47 = vld [vmem:[%s43 + $0xc] sm:$0xf]
    %v64 = vunpack.c.l.b16 %v23
    %v65 = vunpack.c.l.b16 %v24
    %v66 = vunpack.c.l.b16 %v25
    %v67 = vunpack.c.l.b16 %v26
    %v68 = vunpack.c.l.b16 %v27
    %v69 = vunpack.c.l.b16 %v28
    %v70 = vunpack.c.l.b16 %v29
    %v71 = vunpack.c.l.b16 %v30
    %v72 = vunpack.c.l.b16 %v31
    %v73 = vunpack.c.l.b16 %v32
    %v74 = vunpack.c.l.b16 %v33
    %v75 = vunpack.c.l.b16 %v34
    %v76 = vunpack.c.l.b16 %v35
    %v77 = vunpack.c.l.b16 %v36
    %v78 = vunpack.c.l.b16 %v37
    %v79 = vunpack.c.l.b16 %v42
    %v80 = vpack.c.b16 %v65, %v64
    %v81 = vpack.c.b16 %v67, %v66
    %v82 = vpack.c.b16 %v69, %v68
    %v83 = vpack.c.b16 %v71, %v70
    %v84 = vpack.c.b16 %v73, %v72
    %v85 = vpack.c.b16 %v75, %v74
    %v86 = vpack.c.b16 %v77, %v76
    %v87 = vpack.c.b16 %v79, %v78
    %v92 = vunpack.c.l.b16 %v44
    %v93 = vunpack.c.l.b16 %v45
    %v94 = vunpack.c.l.b16 %v46
    %v95 = vunpack.c.l.b16 %v47
    %v96 = vpack.c.b16 %v93, %v92
    %v97 = vpack.c.b16 %v95, %v94
    %vm100 = vcmask 261120
    %v102 = vsel %vm100, %v80, 0
    %v105 = vsel %vm100, %v81, 0
    %v108 = vsel %vm100, %v82, 0
    %v111 = vsel %vm100, %v83, 0
    %v114 = vsel %vm100, %v84, 0
    %v117 = vsel %vm100, %v85, 0
    %v120 = vsel %vm100, %v86, 0
    %v123 = vsel %vm100, %v87, 0
    %125 = vmatprep.subr.bf16.mxu0 0
    %126 = vmatpush1.bf16.msra.mxu0 %v96
    %127 = vmatprep.subr.bf16.mxu0 0
    %128 = vmatpush1.bf16.msra.mxu0 %v97
    %129 = vmatprep.subr.bf16.mxu0 0
    %130 = vmatpush1.bf16.msra.mxu0 0
    %131 = vmatprep.subr.bf16.mxu0 0
    %132 = vmatpush1.bf16.msra.mxu0 0
    %133 = vmatprep.subr.bf16.mxu0 0
    %134 = vmatpush1.bf16.msra.mxu0 0
    %135 = vmatprep.subr.bf16.mxu0 0
    %136 = vmatpush1.bf16.msra.mxu0 0
    %137 = vmatprep.subr.bf16.mxu0 0
    %138 = vmatpush1.bf16.msra.mxu0 0
    %139 = vmatprep.subr.bf16.mxu0 0
    %140 = vmatpush1.bf16.msra.mxu0 0
    %141 = vmatprep.subr.bf16.mxu0 0
    %142 = vmatpush1.bf16.msra.mxu0 0
    %143 = vmatprep.subr.bf16.mxu0 0
    %144 = vmatpush1.bf16.msra.mxu0 0
    %145 = vmatprep.subr.bf16.mxu0 0
    %146 = vmatpush1.bf16.msra.mxu0 0
    %147 = vmatprep.subr.bf16.mxu0 0
    %148 = vmatpush1.bf16.msra.mxu0 0
    %149 = vmatprep.subr.bf16.mxu0 0
    %150 = vmatpush1.bf16.msra.mxu0 0
    %151 = vmatprep.subr.bf16.mxu0 0
    %152 = vmatpush1.bf16.msra.mxu0 0
    %153 = vmatprep.subr.bf16.mxu0 0
    %154 = vmatpush1.bf16.msra.mxu0 0
    %155 = vmatprep.subr.bf16.mxu0 0
    %156 = vmatpush1.bf16.msra.mxu0 0
    %157 = vmatprep.mubr.bf16.mxu0 0
    %158 = vmatmul.mubr.bf16.gmra.mrb[0].mxu0 %v102
    %v159 = vpop.f32.mrb[0].mxu0
    %v160 = vadd.f32 0.0, %v159
    %v161 = vpop.f32.mrb[0].mxu0
    %v162 = vpop.f32.mrb[0].mxu0
    %v163 = vadd.f32 0.0, %v162
    %v164 = vpop.f32.mrb[0].mxu0
    %165 = vmatprep.mubr.bf16.mxu0 0
    %166 = vmatmul.mubr.bf16.gmra.mrb[0].mxu0 %v105
    %v167 = vpop.f32.mrb[0].mxu0
    %v168 = vadd.f32 0.0, %v167
    %v169 = vpop.f32.mrb[0].mxu0
    %v170 = vpop.f32.mrb[0].mxu0
    %v171 = vadd.f32 0.0, %v170
    %v172 = vpop.f32.mrb[0].mxu0
    %173 = vmatprep.mubr.bf16.mxu0 0
    %174 = vmatmul.mubr.bf16.gmra.mrb[0].mxu0 %v108
    %v175 = vpop.f32.mrb[0].mxu0
    %v176 = vadd.f32 0.0, %v175
    %v177 = vpop.f32.mrb[0].mxu0
    %v178 = vpop.f32.mrb[0].mxu0
    %v179 = vadd.f32 0.0, %v178
    %v180 = vpop.f32.mrb[0].mxu0
    %181 = vmatprep.mubr.bf16.mxu0 0
    %182 = vmatmul.mubr.bf16.gmra.mrb[0].mxu0 %v111
    %v183 = vpop.f32.mrb[0].mxu0
    %v184 = vadd.f32 0.0, %v183
    %v185 = vpop.f32.mrb[0].mxu0
    %v186 = vpop.f32.mrb[0].mxu0
    %v187 = vadd.f32 0.0, %v186
    %v188 = vpop.f32.mrb[0].mxu0
    %189 = vmatprep.mubr.bf16.mxu0 0
    %190 = vmatmul.mubr.bf16.gmra.mrb[0].mxu0 %v114
    %v191 = vpop.f32.mrb[0].mxu0
    %v192 = vadd.f32 0.0, %v191
    %v193 = vpop.f32.mrb[0].mxu0
    %v194 = vpop.f32.mrb[0].mxu0
    %v195 = vadd.f32 0.0, %v194
    %v196 = vpop.f32.mrb[0].mxu0
    %197 = vmatprep.mubr.bf16.mxu0 0
    %198 = vmatmul.mubr.bf16.gmra.mrb[0].mxu0 %v117
    %v199 = vpop.f32.mrb[0].mxu0
    %v200 = vadd.f32 0.0, %v199
    %v201 = vpop.f32.mrb[0].mxu0
    %v202 = vpop.f32.mrb[0].mxu0
    %v203 = vadd.f32 0.0, %v202
    %v204 = vpop.f32.mrb[0].mxu0
    %205 = vmatprep.mubr.bf16.mxu0 0
    %206 = vmatmul.mubr.bf16.gmra.mrb[0].mxu0 %v120
    %v207 = vpop.f32.mrb[0].mxu0
    %v208 = vadd.f32 0.0, %v207
    %v209 = vpop.f32.mrb[0].mxu0
    %v210 = vpop.f32.mrb[0].mxu0
    %v211 = vadd.f32 0.0, %v210
    %v212 = vpop.f32.mrb[0].mxu0
    %213 = vmatprep.mubr.bf16.mxu0 0
    %214 = vmatmul.mubr.bf16.gmra.mrb[0].mxu0 %v123
    %v215 = vpop.f32.mrb[0].mxu0
    %v216 = vadd.f32 0.0, %v215
    %v217 = vpop.f32.mrb[0].mxu0
    %v218 = vpop.f32.mrb[0].mxu0
    %v219 = vadd.f32 0.0, %v218
    %v220 = vpop.f32.mrb[0].mxu0
    %221 = vdwg.mxu0
    %v223 = vunpack.c.l.b16 %v22
    %v224 = vpack.c.b16 %v64, %v223
    %v225 = vpack.c.b16 %v66, %v65
    %v226 = vpack.c.b16 %v68, %v67
    %v227 = vpack.c.b16 %v70, %v69
    %v228 = vpack.c.b16 %v72, %v71
    %v229 = vpack.c.b16 %v74, %v73
    %v230 = vpack.c.b16 %v76, %v75
    %v231 = vpack.c.b16 %v78, %v77
    %v236 = vunpack.c.l.b16 %v38
    %v237 = vunpack.c.l.b16 %v39
    %v238 = vunpack.c.l.b16 %v40
    %v239 = vunpack.c.l.b16 %v41
    %v240 = vpack.c.b16 %v237, %v236
    %v241 = vpack.c.b16 %v239, %v238
    %v245 = vsel %vm100, %v224, 0
    %v248 = vsel %vm100, %v225, 0
    %v251 = vsel %vm100, %v226, 0
    %v254 = vsel %vm100, %v227, 0
    %v257 = vsel %vm100, %v228, 0
    %v260 = vsel %vm100, %v229, 0
    %v263 = vsel %vm100, %v230, 0
    %v266 = vsel %vm100, %v231, 0
    %268 = vmatprep.subr.bf16.mxu0 0
    %269 = vmatpush1.bf16.msra.mxu0 %v240
    %270 = vmatprep.subr.bf16.mxu0 0
    %271 = vmatpush1.bf16.msra.mxu0 %v241
    %272 = vmatprep.subr.bf16.mxu0 0
    %273 = vmatpush1.bf16.msra.mxu0 0
    %274 = vmatprep.subr.bf16.mxu0 0
    %275 = vmatpush1.bf16.msra.mxu0 0
    %276 = vmatprep.subr.bf16.mxu0 0
    %277 = vmatpush1.bf16.msra.mxu0 0
    %278 = vmatprep.subr.bf16.mxu0 0
    %279 = vmatpush1.bf16.msra.mxu0 0
    %280 = vmatprep.subr.bf16.mxu0 0
    %281 = vmatpush1.bf16.msra.mxu0 0
    %282 = vmatprep.subr.bf16.mxu0 0
    %283 = vmatpush1.bf16.msra.mxu0 0
    %284 = vmatprep.subr.bf16.mxu0 0
    %285 = vmatpush1.bf16.msra.mxu0 0
    %286 = vmatprep.subr.bf16.mxu0 0
    %287 = vmatpush1.bf16.msra.mxu0 0
    %288 = vmatprep.subr.bf16.mxu0 0
    %289 = vmatpush1.bf16.msra.mxu0 0
    %290 = vmatprep.subr.bf16.mxu0 0
    %291 = vmatpush1.bf16.msra.mxu0 0
    %292 = vmatprep.subr.bf16.mxu0 0
    %293 = vmatpush1.bf16.msra.mxu0 0
    %294 = vmatprep.subr.bf16.mxu0 0
    %295 = vmatpush1.bf16.msra.mxu0 0
    %296 = vmatprep.subr.bf16.mxu0 0
    %297 = vmatpush1.bf16.msra.mxu0 0
    %298 = vmatprep.subr.bf16.mxu0 0
    %299 = vmatpush1.bf16.msra.mxu0 0
    %300 = vmatprep.mubr.bf16.mxu0 0
    %301 = vmatmul.mubr.bf16.gmra.mrb[0].mxu0 %v245
    %v302 = vpop.f32.mrb[0].mxu0
    %v303 = vadd.f32 %v160, %v302
    %v304 = vpop.f32.mrb[0].mxu0
    %v305 = vpop.f32.mrb[0].mxu0
    %v306 = vadd.f32 %v163, %v305
    %v307 = vpop.f32.mrb[0].mxu0
    %308 = vmatprep.mubr.bf16.mxu0 0
    %309 = vmatmul.mubr.bf16.gmra.mrb[0].mxu0 %v248
    %v310 = vpop.f32.mrb[0].mxu0
    %v311 = vadd.f32 %v168, %v310
    %v312 = vpop.f32.mrb[0].mxu0
    %v313 = vpop.f32.mrb[0].mxu0
    %v314 = vadd.f32 %v171, %v313
    %v315 = vpop.f32.mrb[0].mxu0
    %316 = vmatprep.mubr.bf16.mxu0 0
    %317 = vmatmul.mubr.bf16.gmra.mrb[0].mxu0 %v251
    %v318 = vpop.f32.mrb[0].mxu0
    %v319 = vadd.f32 %v176, %v318
    %v320 = vpop.f32.mrb[0].mxu0
    %v321 = vpop.f32.mrb[0].mxu0
    %v322 = vadd.f32 %v179, %v321
    %v323 = vpop.f32.mrb[0].mxu0
    %324 = vmatprep.mubr.bf16.mxu0 0
    %325 = vmatmul.mubr.bf16.gmra.mrb[0].mxu0 %v254
    %v326 = vpop.f32.mrb[0].mxu0
    %v327 = vadd.f32 %v184, %v326
    %v328 = vpop.f32.mrb[0].mxu0
    %v329 = vpop.f32.mrb[0].mxu0
    %v330 = vadd.f32 %v187, %v329
    %v331 = vpop.f32.mrb[0].mxu0
    %332 = vmatprep.mubr.bf16.mxu0 0
    %333 = vmatmul.mubr.bf16.gmra.mrb[0].mxu0 %v257
    %v334 = vpop.f32.mrb[0].mxu0
    %v335 = vadd.f32 %v192, %v334
    %v336 = vpop.f32.mrb[0].mxu0
    %v337 = vpop.f32.mrb[0].mxu0
    %v338 = vadd.f32 %v195, %v337
    %v339 = vpop.f32.mrb[0].mxu0
    %340 = vmatprep.mubr.bf16.mxu0 0
    %341 = vmatmul.mubr.bf16.gmra.mrb[0].mxu0 %v260
    %v342 = vpop.f32.mrb[0].mxu0
    %v343 = vadd.f32 %v200, %v342
    %v344 = vpop.f32.mrb[0].mxu0
    %v345 = vpop.f32.mrb[0].mxu0
    %v346 = vadd.f32 %v203, %v345
    %v347 = vpop.f32.mrb[0].mxu0
    %348 = vmatprep.mubr.bf16.mxu0 0
    %349 = vmatmul.mubr.bf16.gmra.mrb[0].mxu0 %v263
    %v350 = vpop.f32.mrb[0].mxu0
    %v351 = vadd.f32 %v208, %v350
    %v352 = vpop.f32.mrb[0].mxu0
    %v353 = vpop.f32.mrb[0].mxu0
    %v354 = vadd.f32 %v211, %v353
    %v355 = vpop.f32.mrb[0].mxu0
    %356 = vmatprep.mubr.bf16.mxu0 0
    %357 = vmatmul.mubr.bf16.gmra.mrb[0].mxu0 %v266
    %v358 = vpop.f32.mrb[0].mxu0
    %v359 = vadd.f32 %v216, %v358
    %v360 = vpop.f32.mrb[0].mxu0
    %v361 = vpop.f32.mrb[0].mxu0
    %v362 = vadd.f32 %v219, %v361
    %v363 = vpop.f32.mrb[0].mxu0
    %364 = vdwg.mxu0
    %v365 = vld [vmem:[%s0 + $0x8] sm:$0xf]
    %v366 = vld [vmem:[%s0 + $0xc] sm:$0xf]
    %v367 = vld [vmem:[%s0 + $0x10] sm:$0xf]
    %v368 = vld [vmem:[%s0 + $0x14] sm:$0xf]
    %v369 = vld [vmem:[%s0 + $0x18] sm:$0xf]
    %v370 = vld [vmem:[%s0 + $0x1c] sm:$0xf]
    %v371 = vld [vmem:[%s0 + $0x20] sm:$0xf]
    %v372 = vld [vmem:[%s0 + $0x24] sm:$0xf]
    %v373 = vld [vmem:[%s0 + $0x28] sm:$0xf]
    %v374 = vld [vmem:[%s0 + $0x2c] sm:$0xf]
    %v375 = vld [vmem:[%s0 + $0x30] sm:$0xf]
    %v376 = vld [vmem:[%s0 + $0x34] sm:$0xf]
    %v377 = vld [vmem:[%s0 + $0x38] sm:$0xf]
    %v378 = vld [vmem:[%s0 + $0x3c] sm:$0xf]
    %v379 = vld [vmem:[%s0 + $0x40] sm:$0xf]
    %v380 = vld [vmem:[%s0 + $0x44] sm:$0xf]
    %s381 = scalar_lea.vmem %s1, 32
    %v382 = vld [vmem:[%s381] sm:$0xf]
    %v383 = vld [vmem:[%s381 + $0x4] sm:$0xf]
    %v384 = vld [vmem:[%s381 + $0x8] sm:$0xf]
    %v385 = vld [vmem:[%s381 + $0xc] sm:$0xf]
    %v402 = vunpack.c.l.b16 %v365
    %v403 = vunpack.c.l.b16 %v366
    %v404 = vunpack.c.l.b16 %v367
    %v405 = vunpack.c.l.b16 %v368
    %v406 = vunpack.c.l.b16 %v369
    %v407 = vunpack.c.l.b16 %v370
    %v408 = vunpack.c.l.b16 %v371
    %v409 = vunpack.c.l.b16 %v372
    %v410 = vunpack.c.l.b16 %v373
    %v411 = vunpack.c.l.b16 %v374
    %v412 = vunpack.c.l.b16 %v375
    %v413 = vunpack.c.l.b16 %v376
    %v414 = vunpack.c.l.b16 %v377
    %v415 = vunpack.c.l.b16 %v378
    %v416 = vunpack.c.l.b16 %v379
    %v417 = vunpack.c.l.b16 %v380
    %v418 = vpack.c.b16 %v403, %v402
    %v419 = vpack.c.b16 %v405, %v404
    %v420 = vpack.c.b16 %v407, %v406
    %v421 = vpack.c.b16 %v409, %v408
    %v422 = vpack.c.b16 %v411, %v410
    %v423 = vpack.c.b16 %v413, %v412
    %v424 = vpack.c.b16 %v415, %v414
    %v425 = vpack.c.b16 %v417, %v416
    %v430 = vunpack.c.l.b16 %v382
    %v431 = vunpack.c.l.b16 %v383
    %v432 = vunpack.c.l.b16 %v384
    %v433 = vunpack.c.l.b16 %v385
    %v434 = vpack.c.b16 %v431, %v430
    %v435 = vpack.c.b16 %v433, %v432
    %v439 = vsel %vm100, %v418, 0
    %v442 = vsel %vm100, %v419, 0
    %v445 = vsel %vm100, %v420, 0
    %v448 = vsel %vm100, %v421, 0
    %v451 = vsel %vm100, %v422, 0
    %v454 = vsel %vm100, %v423, 0
    %v457 = vsel %vm100, %v424, 0
    %v460 = vsel %vm100, %v425, 0
    %462 = vmatprep.subr.bf16.mxu0 0
    %463 = vmatpush1.bf16.msra.mxu0 %v434
    %464 = vmatprep.subr.bf16.mxu0 0
    %465 = vmatpush1.bf16.msra.mxu0 %v435
    %466 = vmatprep.subr.bf16.mxu0 0
    %467 = vmatpush1.bf16.msra.mxu0 0
    %468 = vmatprep.subr.bf16.mxu0 0
    %469 = vmatpush1.bf16.msra.mxu0 0
    %470 = vmatprep.subr.bf16.mxu0 0
    %471 = vmatpush1.bf16.msra.mxu0 0
    %472 = vmatprep.subr.bf16.mxu0 0
    %473 = vmatpush1.bf16.msra.mxu0 0
    %474 = vmatprep.subr.bf16.mxu0 0
    %475 = vmatpush1.bf16.msra.mxu0 0
    %476 = vmatprep.subr.bf16.mxu0 0
    %477 = vmatpush1.bf16.msra.mxu0 0
    %478 = vmatprep.subr.bf16.mxu0 0
    %479 = vmatpush1.bf16.msra.mxu0 0
    %480 = vmatprep.subr.bf16.mxu0 0
    %481 = vmatpush1.bf16.msra.mxu0 0
    %482 = vmatprep.subr.bf16.mxu0 0
    %483 = vmatpush1.bf16.msra.mxu0 0
    %484 = vmatprep.subr.bf16.mxu0 0
    %485 = vmatpush1.bf16.msra.mxu0 0
    %486 = vmatprep.subr.bf16.mxu0 0
    %487 = vmatpush1.bf16.msra.mxu0 0
    %488 = vmatprep.subr.bf16.mxu0 0
    %489 = vmatpush1.bf16.msra.mxu0 0
    %490 = vmatprep.subr.bf16.mxu0 0
    %491 = vmatpush1.bf16.msra.mxu0 0
    %492 = vmatprep.subr.bf16.mxu0 0
    %493 = vmatpush1.bf16.msra.mxu0 0
    %494 = vmatprep.mubr.bf16.mxu0 0
    %495 = vmatmul.mubr.bf16.gmra.mrb[0].mxu0 %v439
    %v496 = vpop.f32.mrb[0].mxu0
    %v497 = vadd.f32 0.0, %v496
    %v498 = vpop.f32.mrb[0].mxu0
    %v499 = vpop.f32.mrb[0].mxu0
    %v500 = vadd.f32 0.0, %v499
    %v501 = vpop.f32.mrb[0].mxu0
    %502 = vmatprep.mubr.bf16.mxu0 0
    %503 = vmatmul.mubr.bf16.gmra.mrb[0].mxu0 %v442
    %v504 = vpop.f32.mrb[0].mxu0
    %v505 = vadd.f32 0.0, %v504
    %v506 = vpop.f32.mrb[0].mxu0
    %v507 = vpop.f32.mrb[0].mxu0
    %v508 = vadd.f32 0.0, %v507
    %v509 = vpop.f32.mrb[0].mxu0
    %510 = vmatprep.mubr.bf16.mxu0 0
    %511 = vmatmul.mubr.bf16.gmra.mrb[0].mxu0 %v445
    %v512 = vpop.f32.mrb[0].mxu0
    %v513 = vadd.f32 0.0, %v512
    %v514 = vpop.f32.mrb[0].mxu0
    %v515 = vpop.f32.mrb[0].mxu0
    %v516 = vadd.f32 0.0, %v515
    %v517 = vpop.f32.mrb[0].mxu0
    %518 = vmatprep.mubr.bf16.mxu0 0
    %519 = vmatmul.mubr.bf16.gmra.mrb[0].mxu0 %v448
    %v520 = vpop.f32.mrb[0].mxu0
    %v521 = vadd.f32 0.0, %v520
    %v522 = vpop.f32.mrb[0].mxu0
    %v523 = vpop.f32.mrb[0].mxu0
    %v524 = vadd.f32 0.0, %v523
    %v525 = vpop.f32.mrb[0].mxu0
    %526 = vmatprep.mubr.bf16.mxu0 0
    %527 = vmatmul.mubr.bf16.gmra.mrb[0].mxu0 %v451
    %v528 = vpop.f32.mrb[0].mxu0
    %v529 = vadd.f32 0.0, %v528
    %v530 = vpop.f32.mrb[0].mxu0
    %v531 = vpop.f32.mrb[0].mxu0
    %v532 = vadd.f32 0.0, %v531
    %v533 = vpop.f32.mrb[0].mxu0
    %534 = vmatprep.mubr.bf16.mxu0 0
    %535 = vmatmul.mubr.bf16.gmra.mrb[0].mxu0 %v454
    %v536 = vpop.f32.mrb[0].mxu0
    %v537 = vadd.f32 0.0, %v536
    %v538 = vpop.f32.mrb[0].mxu0
    %v539 = vpop.f32.mrb[0].mxu0
    %v540 = vadd.f32 0.0, %v539
    %v541 = vpop.f32.mrb[0].mxu0
    %542 = vmatprep.mubr.bf16.mxu0 0
    %543 = vmatmul.mubr.bf16.gmra.mrb[0].mxu0 %v457
    %v544 = vpop.f32.mrb[0].mxu0
    %v545 = vadd.f32 0.0, %v544
    %v546 = vpop.f32.mrb[0].mxu0
    %v547 = vpop.f32.mrb[0].mxu0
    %v548 = vadd.f32 0.0, %v547
    %v549 = vpop.f32.mrb[0].mxu0
    %550 = vmatprep.mubr.bf16.mxu0 0
    %551 = vmatmul.mubr.bf16.gmra.mrb[0].mxu0 %v460
    %v552 = vpop.f32.mrb[0].mxu0
    %v553 = vadd.f32 0.0, %v552
    %v554 = vpop.f32.mrb[0].mxu0
    %v555 = vpop.f32.mrb[0].mxu0
    %v556 = vadd.f32 0.0, %v555
    %v557 = vpop.f32.mrb[0].mxu0
    %558 = vdwg.mxu0
    %v559 = vadd.f32 %v303, %v497
    %v560 = vadd.f32 %v306, %v500
    %v561 = vadd.f32 %v311, %v505
    %v562 = vadd.f32 %v314, %v508
    %v563 = vadd.f32 %v319, %v513
    %v564 = vadd.f32 %v322, %v516
    %v565 = vadd.f32 %v327, %v521
    %v566 = vadd.f32 %v330, %v524
    %v567 = vadd.f32 %v335, %v529
    %v568 = vadd.f32 %v338, %v532
    %v569 = vadd.f32 %v343, %v537
    %v570 = vadd.f32 %v346, %v540
    %v571 = vadd.f32 %v351, %v545
    %v572 = vadd.f32 %v354, %v548
    %v573 = vadd.f32 %v359, %v553
    %v574 = vadd.f32 %v362, %v556
    %v575 = vld [vmem:[%s0 + $0xc] sm:$0xf]
    %v576 = vld [vmem:[%s0 + $0x10] sm:$0xf]
    %v577 = vld [vmem:[%s0 + $0x14] sm:$0xf]
    %v578 = vld [vmem:[%s0 + $0x18] sm:$0xf]
    %v579 = vld [vmem:[%s0 + $0x1c] sm:$0xf]
    %v580 = vld [vmem:[%s0 + $0x20] sm:$0xf]
    %v581 = vld [vmem:[%s0 + $0x24] sm:$0xf]
    %v582 = vld [vmem:[%s0 + $0x28] sm:$0xf]
    %v583 = vld [vmem:[%s0 + $0x2c] sm:$0xf]
    %v584 = vld [vmem:[%s0 + $0x30] sm:$0xf]
    %v585 = vld [vmem:[%s0 + $0x34] sm:$0xf]
    %v586 = vld [vmem:[%s0 + $0x38] sm:$0xf]
    %v587 = vld [vmem:[%s0 + $0x3c] sm:$0xf]
    %v588 = vld [vmem:[%s0 + $0x40] sm:$0xf]
    %v589 = vld [vmem:[%s0 + $0x44] sm:$0xf]
    %v590 = vld [vmem:[%s0 + $0x48] sm:$0xf]
    %s591 = scalar_lea.vmem %s1, 48
    %v592 = vld [vmem:[%s591] sm:$0xf]
    %v593 = vld [vmem:[%s591 + $0x4] sm:$0xf]
    %v594 = vld [vmem:[%s591 + $0x8] sm:$0xf]
    %v595 = vld [vmem:[%s591 + $0xc] sm:$0xf]
    %v612 = vunpack.c.l.b16 %v575
    %v613 = vunpack.c.l.b16 %v576
    %v614 = vunpack.c.l.b16 %v577
    %v615 = vunpack.c.l.b16 %v578
    %v616 = vunpack.c.l.b16 %v579
    %v617 = vunpack.c.l.b16 %v580
    %v618 = vunpack.c.l.b16 %v581
    %v619 = vunpack.c.l.b16 %v582
    %v620 = vunpack.c.l.b16 %v583
    %v621 = vunpack.c.l.b16 %v584
    %v622 = vunpack.c.l.b16 %v585
    %v623 = vunpack.c.l.b16 %v586
    %v624 = vunpack.c.l.b16 %v587
    %v625 = vunpack.c.l.b16 %v588
    %v626 = vunpack.c.l.b16 %v589
    %v627 = vunpack.c.l.b16 %v590
    %v628 = vpack.c.b16 %v613, %v612
    %v629 = vpack.c.b16 %v615, %v614
    %v630 = vpack.c.b16 %v617, %v616
    %v631 = vpack.c.b16 %v619, %v618
    %v632 = vpack.c.b16 %v621, %v620
    %v633 = vpack.c.b16 %v623, %v622
    %v634 = vpack.c.b16 %v625, %v624
    %v635 = vpack.c.b16 %v627, %v626
    %v640 = vunpack.c.l.b16 %v592
    %v641 = vunpack.c.l.b16 %v593
    %v642 = vunpack.c.l.b16 %v594
    %v643 = vunpack.c.l.b16 %v595
    %v644 = vpack.c.b16 %v641, %v640
    %v645 = vpack.c.b16 %v643, %v642
    %v649 = vsel %vm100, %v628, 0
    %v652 = vsel %vm100, %v629, 0
    %v655 = vsel %vm100, %v630, 0
    %v658 = vsel %vm100, %v631, 0
    %v661 = vsel %vm100, %v632, 0
    %v664 = vsel %vm100, %v633, 0
    %v667 = vsel %vm100, %v634, 0
    %v670 = vsel %vm100, %v635, 0
    %672 = vmatprep.subr.bf16.mxu0 0
    %673 = vmatpush1.bf16.msra.mxu0 %v644
    %674 = vmatprep.subr.bf16.mxu0 0
    %675 = vmatpush1.bf16.msra.mxu0 %v645
    %676 = vmatprep.subr.bf16.mxu0 0
    %677 = vmatpush1.bf16.msra.mxu0 0
    %678 = vmatprep.subr.bf16.mxu0 0
    %679 = vmatpush1.bf16.msra.mxu0 0
    %680 = vmatprep.subr.bf16.mxu0 0
    %681 = vmatpush1.bf16.msra.mxu0 0
    %682 = vmatprep.subr.bf16.mxu0 0
    %683 = vmatpush1.bf16.msra.mxu0 0
    %684 = vmatprep.subr.bf16.mxu0 0
    %685 = vmatpush1.bf16.msra.mxu0 0
    %686 = vmatprep.subr.bf16.mxu0 0
    %687 = vmatpush1.bf16.msra.mxu0 0
    %688 = vmatprep.subr.bf16.mxu0 0
    %689 = vmatpush1.bf16.msra.mxu0 0
    %690 = vmatprep.subr.bf16.mxu0 0
    %691 = vmatpush1.bf16.msra.mxu0 0
    %692 = vmatprep.subr.bf16.mxu0 0
    %693 = vmatpush1.bf16.msra.mxu0 0
    %694 = vmatprep.subr.bf16.mxu0 0
    %695 = vmatpush1.bf16.msra.mxu0 0
    %696 = vmatprep.subr.bf16.mxu0 0
    %697 = vmatpush1.bf16.msra.mxu0 0
    %698 = vmatprep.subr.bf16.mxu0 0
    %699 = vmatpush1.bf16.msra.mxu0 0
    %700 = vmatprep.subr.bf16.mxu0 0
    %701 = vmatpush1.bf16.msra.mxu0 0
    %702 = vmatprep.subr.bf16.mxu0 0
    %703 = vmatpush1.bf16.msra.mxu0 0
    %704 = vmatprep.mubr.bf16.mxu0 0
    %705 = vmatmul.mubr.bf16.gmra.mrb[0].mxu0 %v649
    %v706 = vpop.f32.mrb[0].mxu0
    %v707 = vadd.f32 0.0, %v706
    %v708 = vpop.f32.mrb[0].mxu0
    %v709 = vpop.f32.mrb[0].mxu0
    %v710 = vadd.f32 0.0, %v709
    %v711 = vpop.f32.mrb[0].mxu0
    %712 = vmatprep.mubr.bf16.mxu0 0
    %713 = vmatmul.mubr.bf16.gmra.mrb[0].mxu0 %v652
    %v714 = vpop.f32.mrb[0].mxu0
    %v715 = vadd.f32 0.0, %v714
    %v716 = vpop.f32.mrb[0].mxu0
    %v717 = vpop.f32.mrb[0].mxu0
    %v718 = vadd.f32 0.0, %v717
    %v719 = vpop.f32.mrb[0].mxu0
    %720 = vmatprep.mubr.bf16.mxu0 0
    %721 = vmatmul.mubr.bf16.gmra.mrb[0].mxu0 %v655
    %v722 = vpop.f32.mrb[0].mxu0
    %v723 = vadd.f32 0.0, %v722
    %v724 = vpop.f32.mrb[0].mxu0
    %v725 = vpop.f32.mrb[0].mxu0
    %v726 = vadd.f32 0.0, %v725
    %v727 = vpop.f32.mrb[0].mxu0
    %728 = vmatprep.mubr.bf16.mxu0 0
    %729 = vmatmul.mubr.bf16.gmra.mrb[0].mxu0 %v658
    %v730 = vpop.f32.mrb[0].mxu0
    %v731 = vadd.f32 0.0, %v730
    %v732 = vpop.f32.mrb[0].mxu0
    %v733 = vpop.f32.mrb[0].mxu0
    %v734 = vadd.f32 0.0, %v733
    %v735 = vpop.f32.mrb[0].mxu0
    %736 = vmatprep.mubr.bf16.mxu0 0
    %737 = vmatmul.mubr.bf16.gmra.mrb[0].mxu0 %v661
    %v738 = vpop.f32.mrb[0].mxu0
    %v739 = vadd.f32 0.0, %v738
    %v740 = vpop.f32.mrb[0].mxu0
    %v741 = vpop.f32.mrb[0].mxu0
    %v742 = vadd.f32 0.0, %v741
    %v743 = vpop.f32.mrb[0].mxu0
    %744 = vmatprep.mubr.bf16.mxu0 0
    %745 = vmatmul.mubr.bf16.gmra.mrb[0].mxu0 %v664
    %v746 = vpop.f32.mrb[0].mxu0
    %v747 = vadd.f32 0.0, %v746
    %v748 = vpop.f32.mrb[0].mxu0
    %v749 = vpop.f32.mrb[0].mxu0
    %v750 = vadd.f32 0.0, %v749
    %v751 = vpop.f32.mrb[0].mxu0
    %752 = vmatprep.mubr.bf16.mxu0 0
    %753 = vmatmul.mubr.bf16.gmra.mrb[0].mxu0 %v667
    %v754 = vpop.f32.mrb[0].mxu0
    %v755 = vadd.f32 0.0, %v754
    %v756 = vpop.f32.mrb[0].mxu0
    %v757 = vpop.f32.mrb[0].mxu0
    %v758 = vadd.f32 0.0, %v757
    %v759 = vpop.f32.mrb[0].mxu0
    %760 = vmatprep.mubr.bf16.mxu0 0
    %761 = vmatmul.mubr.bf16.gmra.mrb[0].mxu0 %v670
    %v762 = vpop.f32.mrb[0].mxu0
    %v763 = vadd.f32 0.0, %v762
    %v764 = vpop.f32.mrb[0].mxu0
    %v765 = vpop.f32.mrb[0].mxu0
    %v766 = vadd.f32 0.0, %v765
    %v767 = vpop.f32.mrb[0].mxu0
    %768 = vdwg.mxu0
    %v769 = vadd.f32 %v559, %v707
    %v770 = vadd.f32 %v560, %v710
    %v771 = vadd.f32 %v561, %v715
    %v772 = vadd.f32 %v562, %v718
    %v773 = vadd.f32 %v563, %v723
    %v774 = vadd.f32 %v564, %v726
    %v775 = vadd.f32 %v565, %v731
    %v776 = vadd.f32 %v566, %v734
    %v777 = vadd.f32 %v567, %v739
    %v778 = vadd.f32 %v568, %v742
    %v779 = vadd.f32 %v569, %v747
    %v780 = vadd.f32 %v570, %v750
    %v781 = vadd.f32 %v571, %v755
    %v782 = vadd.f32 %v572, %v758
    %v783 = vadd.f32 %v573, %v763
    %v784 = vadd.f32 %v574, %v766
    %v785 = vld [vmem:[%s0 + $0x10] sm:$0xf]
    %v786 = vld [vmem:[%s0 + $0x14] sm:$0xf]
    %v787 = vld [vmem:[%s0 + $0x18] sm:$0xf]
    %v788 = vld [vmem:[%s0 + $0x1c] sm:$0xf]
    %v789 = vld [vmem:[%s0 + $0x20] sm:$0xf]
    %v790 = vld [vmem:[%s0 + $0x24] sm:$0xf]
    %v791 = vld [vmem:[%s0 + $0x28] sm:$0xf]
    %v792 = vld [vmem:[%s0 + $0x2c] sm:$0xf]
    %v793 = vld [vmem:[%s0 + $0x30] sm:$0xf]
    %v794 = vld [vmem:[%s0 + $0x34] sm:$0xf]
    %v795 = vld [vmem:[%s0 + $0x38] sm:$0xf]
    %v796 = vld [vmem:[%s0 + $0x3c] sm:$0xf]
    %v797 = vld [vmem:[%s0 + $0x40] sm:$0xf]
    %v798 = vld [vmem:[%s0 + $0x44] sm:$0xf]
    %v799 = vld [vmem:[%s0 + $0x48] sm:$0xf]
    %v800 = vld [vmem:[%s0 + $0x4c] sm:$0xf]
    %s801 = scalar_lea.vmem %s1, 64
    %v802 = vld [vmem:[%s801] sm:$0xf]
    %v803 = vld [vmem:[%s801 + $0x4] sm:$0xf]
    %v804 = vld [vmem:[%s801 + $0x8] sm:$0xf]
    %v805 = vld [vmem:[%s801 + $0xc] sm:$0xf]
    %v822 = vunpack.c.l.b16 %v785
    %v823 = vunpack.c.l.b16 %v786
    %v824 = vunpack.c.l.b16 %v787
    %v825 = vunpack.c.l.b16 %v788
    %v826 = vunpack.c.l.b16 %v789
    %v827 = vunpack.c.l.b16 %v790
    %v828 = vunpack.c.l.b16 %v791
    %v829 = vunpack.c.l.b16 %v792
    %v830 = vunpack.c.l.b16 %v793
    %v831 = vunpack.c.l.b16 %v794
    %v832 = vunpack.c.l.b16 %v795
    %v833 = vunpack.c.l.b16 %v796
    %v834 = vunpack.c.l.b16 %v797
    %v835 = vunpack.c.l.b16 %v798
    %v836 = vunpack.c.l.b16 %v799
    %v837 = vunpack.c.l.b16 %v800
    %v838 = vpack.c.b16 %v823, %v822
    %v839 = vpack.c.b16 %v825, %v824
    %v840 = vpack.c.b16 %v827, %v826
    %v841 = vpack.c.b16 %v829, %v828
    %v842 = vpack.c.b16 %v831, %v830
    %v843 = vpack.c.b16 %v833, %v832
    %v844 = vpack.c.b16 %v835, %v834
    %v845 = vpack.c.b16 %v837, %v836
    %v850 = vunpack.c.l.b16 %v802
    %v851 = vunpack.c.l.b16 %v803
    %v852 = vunpack.c.l.b16 %v804
    %v853 = vunpack.c.l.b16 %v805
    %v854 = vpack.c.b16 %v851, %v850
    %v855 = vpack.c.b16 %v853, %v852
    %v859 = vsel %vm100, %v838, 0
    %v862 = vsel %vm100, %v839, 0
    %v865 = vsel %vm100, %v840, 0
    %v868 = vsel %vm100, %v841, 0
    %v871 = vsel %vm100, %v842, 0
    %v874 = vsel %vm100, %v843, 0
    %v877 = vsel %vm100, %v844, 0
    %v880 = vsel %vm100, %v845, 0
    %882 = vmatprep.subr.bf16.mxu0 0
    %883 = vmatpush1.bf16.msra.mxu0 %v854
    %884 = vmatprep.subr.bf16.mxu0 0
    %885 = vmatpush1.bf16.msra.mxu0 %v855
    %886 = vmatprep.subr.bf16.mxu0 0
    %887 = vmatpush1.bf16.msra.mxu0 0
    %888 = vmatprep.subr.bf16.mxu0 0
    %889 = vmatpush1.bf16.msra.mxu0 0
    %890 = vmatprep.subr.bf16.mxu0 0
    %891 = vmatpush1.bf16.msra.mxu0 0
    %892 = vmatprep.subr.bf16.mxu0 0
    %893 = vmatpush1.bf16.msra.mxu0 0
    %894 = vmatprep.subr.bf16.mxu0 0
    %895 = vmatpush1.bf16.msra.mxu0 0
    %896 = vmatprep.subr.bf16.mxu0 0
    %897 = vmatpush1.bf16.msra.mxu0 0
    %898 = vmatprep.subr.bf16.mxu0 0
    %899 = vmatpush1.bf16.msra.mxu0 0
    %900 = vmatprep.subr.bf16.mxu0 0
    %901 = vmatpush1.bf16.msra.mxu0 0
    %902 = vmatprep.subr.bf16.mxu0 0
    %903 = vmatpush1.bf16.msra.mxu0 0
    %904 = vmatprep.subr.bf16.mxu0 0
    %905 = vmatpush1.bf16.msra.mxu0 0
    %906 = vmatprep.subr.bf16.mxu0 0
    %907 = vmatpush1.bf16.msra.mxu0 0
    %908 = vmatprep.subr.bf16.mxu0 0
    %909 = vmatpush1.bf16.msra.mxu0 0
    %910 = vmatprep.subr.bf16.mxu0 0
    %911 = vmatpush1.bf16.msra.mxu0 0
    %912 = vmatprep.subr.bf16.mxu0 0
    %913 = vmatpush1.bf16.msra.mxu0 0
    %914 = vmatprep.mubr.bf16.mxu0 0
    %915 = vmatmul.mubr.bf16.gmra.mrb[0].mxu0 %v859
    %v916 = vpop.f32.mrb[0].mxu0
    %v917 = vadd.f32 0.0, %v916
    %v918 = vpop.f32.mrb[0].mxu0
    %v919 = vpop.f32.mrb[0].mxu0
    %v920 = vadd.f32 0.0, %v919
    %v921 = vpop.f32.mrb[0].mxu0
    %922 = vmatprep.mubr.bf16.mxu0 0
    %923 = vmatmul.mubr.bf16.gmra.mrb[0].mxu0 %v862
    %v924 = vpop.f32.mrb[0].mxu0
    %v925 = vadd.f32 0.0, %v924
    %v926 = vpop.f32.mrb[0].mxu0
    %v927 = vpop.f32.mrb[0].mxu0
    %v928 = vadd.f32 0.0, %v927
    %v929 = vpop.f32.mrb[0].mxu0
    %930 = vmatprep.mubr.bf16.mxu0 0
    %931 = vmatmul.mubr.bf16.gmra.mrb[0].mxu0 %v865
    %v932 = vpop.f32.mrb[0].mxu0
    %v933 = vadd.f32 0.0, %v932
    %v934 = vpop.f32.mrb[0].mxu0
    %v935 = vpop.f32.mrb[0].mxu0
    %v936 = vadd.f32 0.0, %v935
    %v937 = vpop.f32.mrb[0].mxu0
    %938 = vmatprep.mubr.bf16.mxu0 0
    %939 = vmatmul.mubr.bf16.gmra.mrb[0].mxu0 %v868
    %v940 = vpop.f32.mrb[0].mxu0
    %v941 = vadd.f32 0.0, %v940
    %v942 = vpop.f32.mrb[0].mxu0
    %v943 = vpop.f32.mrb[0].mxu0
    %v944 = vadd.f32 0.0, %v943
    %v945 = vpop.f32.mrb[0].mxu0
    %946 = vmatprep.mubr.bf16.mxu0 0
    %947 = vmatmul.mubr.bf16.gmra.mrb[0].mxu0 %v871
    %v948 = vpop.f32.mrb[0].mxu0
    %v949 = vadd.f32 0.0, %v948
    %v950 = vpop.f32.mrb[0].mxu0
    %v951 = vpop.f32.mrb[0].mxu0
    %v952 = vadd.f32 0.0, %v951
    %v953 = vpop.f32.mrb[0].mxu0
    %954 = vmatprep.mubr.bf16.mxu0 0
    %955 = vmatmul.mubr.bf16.gmra.mrb[0].mxu0 %v874
    %v956 = vpop.f32.mrb[0].mxu0
    %v957 = vadd.f32 0.0, %v956
    %v958 = vpop.f32.mrb[0].mxu0
    %v959 = vpop.f32.mrb[0].mxu0
    %v960 = vadd.f32 0.0, %v959
    %v961 = vpop.f32.mrb[0].mxu0
    %962 = vmatprep.mubr.bf16.mxu0 0
    %963 = vmatmul.mubr.bf16.gmra.mrb[0].mxu0 %v877
    %v964 = vpop.f32.mrb[0].mxu0
    %v965 = vadd.f32 0.0, %v964
    %v966 = vpop.f32.mrb[0].mxu0
    %v967 = vpop.f32.mrb[0].mxu0
    %v968 = vadd.f32 0.0, %v967
    %v969 = vpop.f32.mrb[0].mxu0
    %970 = vmatprep.mubr.bf16.mxu0 0
    %971 = vmatmul.mubr.bf16.gmra.mrb[0].mxu0 %v880
    %v972 = vpop.f32.mrb[0].mxu0
    %v973 = vadd.f32 0.0, %v972
    %v974 = vpop.f32.mrb[0].mxu0
    %v975 = vpop.f32.mrb[0].mxu0
    %v976 = vadd.f32 0.0, %v975
    %v977 = vpop.f32.mrb[0].mxu0
    %978 = vdwg.mxu0
    %v979 = vadd.f32 %v769, %v917
    %v980 = vadd.f32 %v770, %v920
    %v981 = vadd.f32 %v771, %v925
    %v982 = vadd.f32 %v772, %v928
    %v983 = vadd.f32 %v773, %v933
    %v984 = vadd.f32 %v774, %v936
    %v985 = vadd.f32 %v775, %v941
    %v986 = vadd.f32 %v776, %v944
    %v987 = vadd.f32 %v777, %v949
    %v988 = vadd.f32 %v778, %v952
    %v989 = vadd.f32 %v779, %v957
    %v990 = vadd.f32 %v780, %v960
    %v991 = vadd.f32 %v781, %v965
    %v992 = vadd.f32 %v782, %v968
    %v993 = vadd.f32 %v783, %v973
    %v994 = vadd.f32 %v784, %v976
    %v995 = vld [vmem:[%s2] sm:$0x1]
    %v997 = vlaneseq
    %v998 = vshrl.u32 %v997, 7
    %v999 = vsub.s32 0, %v998
    %v1000 = vrot.slane %v995, %v999
    %v1002 = vadd.f32 %v979, %v1000
    %v1003 = vadd.f32 %v980, %v1000
    %v1004 = vadd.f32 %v981, %v1000
    %v1005 = vadd.f32 %v982, %v1000
    %v1006 = vadd.f32 %v983, %v1000
    %v1007 = vadd.f32 %v984, %v1000
    %v1008 = vadd.f32 %v985, %v1000
    %v1009 = vadd.f32 %v986, %v1000
    %v1010 = vadd.f32 %v987, %v1000
    %v1011 = vadd.f32 %v988, %v1000
    %v1012 = vadd.f32 %v989, %v1000
    %v1013 = vadd.f32 %v990, %v1000
    %v1014 = vadd.f32 %v991, %v1000
    %v1015 = vadd.f32 %v992, %v1000
    %v1016 = vadd.f32 %v993, %v1000
    %v1017 = vadd.f32 %v994, %v1000
    %v1018 = vpack.c.bf16 %v1003, %v1002
    %v1019 = vpack.c.bf16 %v1005, %v1004
    %v1020 = vpack.c.bf16 %v1007, %v1006
    %v1021 = vpack.c.bf16 %v1009, %v1008
    %v1022 = vpack.c.bf16 %v1011, %v1010
    %v1023 = vpack.c.bf16 %v1013, %v1012
    %v1024 = vpack.c.bf16 %v1015, %v1014
    %v1025 = vpack.c.bf16 %v1017, %v1016
    %v1026 = vld [vmem:[%s3] sm:$0xff]
    %v1027 = vld [vmem:[%s3 + $0x8] sm:$0xff]
    %v1028 = vld [vmem:[%s3 + $0x10] sm:$0xff]
    %v1029 = vld [vmem:[%s3 + $0x18] sm:$0xff]
    %v1030 = vld [vmem:[%s4] sm:$0x3]
    %v1032 = vlaneseq
    %v1033 = vshrl.u32 %v1032, 7
    %v1034 = vsub.s32 0, %v1033
    %v1035 = vrot.slane %v1030, %v1034
    %v1036 = vlaneseq
    %v1037 = vshrl.u32 %v1036, 7
    %v1038 = vsub.s32 1, %v1037
    %v1039 = vrot.slane %v1030, %v1038
    %v1046 = vunpack.c.l.b16 %v1026
    %v1047 = vunpack.c.h.b16 %v1026
    %v1048 = vunpack.c.l.b16 %v1027
    %v1049 = vunpack.c.h.b16 %v1027
    %v1050 = vunpack.c.l.b16 %v1028
    %v1051 = vunpack.c.h.b16 %v1028
    %v1052 = vunpack.c.l.b16 %v1029
    %v1053 = vunpack.c.h.b16 %v1029
    %v1054 = vpack.c.b16 %v1048, %v1046
    %v1055 = vpack.c.b16 %v1049, %v1047
    %v1056 = vpack.c.b16 %v1052, %v1050
    %v1057 = vpack.c.b16 %v1053, %v1051
    %v1063 = vsel %vm100, %v1018, 0
    %v1066 = vsel %vm100, %v1019, 0
    %v1069 = vsel %vm100, %v1020, 0
    %v1072 = vsel %vm100, %v1021, 0
    %v1075 = vsel %vm100, %v1022, 0
    %v1078 = vsel %vm100, %v1023, 0
    %v1081 = vsel %vm100, %v1024, 0
    %v1084 = vsel %vm100, %v1025, 0
    %1086 = vmatprep.subr.bf16.mxu0 %v1055
    %1087 = vmatpush1.bf16.msra.mxu0 %v1054
    %1088 = vmatprep.subr.bf16.mxu0 %v1057
    %1089 = vmatpush1.bf16.msra.mxu0 %v1056
    %1090 = vmatprep.subr.bf16.mxu0 0
    %1091 = vmatpush1.bf16.msra.mxu0 0
    %1092 = vmatprep.subr.bf16.mxu0 0
    %1093 = vmatpush1.bf16.msra.mxu0 0
    %1094 = vmatprep.subr.bf16.mxu0 0
    %1095 = vmatpush1.bf16.msra.mxu0 0
    %1096 = vmatprep.subr.bf16.mxu0 0
    %1097 = vmatpush1.bf16.msra.mxu0 0
    %1098 = vmatprep.subr.bf16.mxu0 0
    %1099 = vmatpush1.bf16.msra.mxu0 0
    %1100 = vmatprep.subr.bf16.mxu0 0
    %1101 = vmatpush1.bf16.msra.mxu0 0
    %1102 = vmatprep.subr.bf16.mxu0 0
    %1103 = vmatpush1.bf16.msra.mxu0 0
    %1104 = vmatprep.subr.bf16.mxu0 0
    %1105 = vmatpush1.bf16.msra.mxu0 0
    %1106 = vmatprep.subr.bf16.mxu0 0
    %1107 = vmatpush1.bf16.msra.mxu0 0
    %1108 = vmatprep.subr.bf16.mxu0 0
    %1109 = vmatpush1.bf16.msra.mxu0 0
    %1110 = vmatprep.subr.bf16.mxu0 0
    %1111 = vmatpush1.bf16.msra.mxu0 0
    %1112 = vmatprep.subr.bf16.mxu0 0
    %1113 = vmatpush1.bf16.msra.mxu0 0
    %1114 = vmatprep.subr.bf16.mxu0 0
    %1115 = vmatpush1.bf16.msra.mxu0 0
    %1116 = vmatprep.subr.bf16.mxu0 0
    %1117 = vmatpush1.bf16.msra.mxu0 0
    %1118 = vmatprep.mubr.bf16.mxu0 0
    %1119 = vmatmul.mubr.bf16.gmra.mrb[0].mxu0 %v1063
    %v1120 = vpop.f32.mrb[0].mxu0
    %v1121 = vadd.f32 %v1035, %v1120
    %v1122 = vpop.f32.mrb[0].mxu0
    %v1123 = vadd.f32 %v1039, %v1122
    %v1124 = vpop.f32.mrb[0].mxu0
    %v1125 = vadd.f32 %v1035, %v1124
    %v1126 = vpop.f32.mrb[0].mxu0
    %v1127 = vadd.f32 %v1039, %v1126
    %1128 = vmatprep.mubr.bf16.mxu0 0
    %1129 = vmatmul.mubr.bf16.gmra.mrb[0].mxu0 %v1066
    %v1130 = vpop.f32.mrb[0].mxu0
    %v1131 = vadd.f32 %v1035, %v1130
    %v1132 = vpop.f32.mrb[0].mxu0
    %v1133 = vadd.f32 %v1039, %v1132
    %v1134 = vpop.f32.mrb[0].mxu0
    %v1135 = vadd.f32 %v1035, %v1134
    %v1136 = vpop.f32.mrb[0].mxu0
    %v1137 = vadd.f32 %v1039, %v1136
    %1138 = vmatprep.mubr.bf16.mxu0 0
    %1139 = vmatmul.mubr.bf16.gmra.mrb[0].mxu0 %v1069
    %v1140 = vpop.f32.mrb[0].mxu0
    %v1141 = vadd.f32 %v1035, %v1140
    %v1142 = vpop.f32.mrb[0].mxu0
    %v1143 = vadd.f32 %v1039, %v1142
    %v1144 = vpop.f32.mrb[0].mxu0
    %v1145 = vadd.f32 %v1035, %v1144
    %v1146 = vpop.f32.mrb[0].mxu0
    %v1147 = vadd.f32 %v1039, %v1146
    %1148 = vmatprep.mubr.bf16.mxu0 0
    %1149 = vmatmul.mubr.bf16.gmra.mrb[0].mxu0 %v1072
    %v1150 = vpop.f32.mrb[0].mxu0
    %v1151 = vadd.f32 %v1035, %v1150
    %v1152 = vpop.f32.mrb[0].mxu0
    %v1153 = vadd.f32 %v1039, %v1152
    %v1154 = vpop.f32.mrb[0].mxu0
    %v1155 = vadd.f32 %v1035, %v1154
    %v1156 = vpop.f32.mrb[0].mxu0
    %v1157 = vadd.f32 %v1039, %v1156
    %1158 = vmatprep.mubr.bf16.mxu0 0
    %1159 = vmatmul.mubr.bf16.gmra.mrb[0].mxu0 %v1075
    %v1160 = vpop.f32.mrb[0].mxu0
    %v1161 = vadd.f32 %v1035, %v1160
    %v1162 = vpop.f32.mrb[0].mxu0
    %v1163 = vadd.f32 %v1039, %v1162
    %v1164 = vpop.f32.mrb[0].mxu0
    %v1165 = vadd.f32 %v1035, %v1164
    %v1166 = vpop.f32.mrb[0].mxu0
    %v1167 = vadd.f32 %v1039, %v1166
    %1168 = vmatprep.mubr.bf16.mxu0 0
    %1169 = vmatmul.mubr.bf16.gmra.mrb[0].mxu0 %v1078
    %v1170 = vpop.f32.mrb[0].mxu0
    %v1171 = vadd.f32 %v1035, %v1170
    %v1172 = vpop.f32.mrb[0].mxu0
    %v1173 = vadd.f32 %v1039, %v1172
    %v1174 = vpop.f32.mrb[0].mxu0
    %v1175 = vadd.f32 %v1035, %v1174
    %v1176 = vpop.f32.mrb[0].mxu0
    %v1177 = vadd.f32 %v1039, %v1176
    %1178 = vmatprep.mubr.bf16.mxu0 0
    %1179 = vmatmul.mubr.bf16.gmra.mrb[0].mxu0 %v1081
    %v1180 = vpop.f32.mrb[0].mxu0
    %v1181 = vadd.f32 %v1035, %v1180
    %v1182 = vpop.f32.mrb[0].mxu0
    %v1183 = vadd.f32 %v1039, %v1182
    %v1184 = vpop.f32.mrb[0].mxu0
    %v1185 = vadd.f32 %v1035, %v1184
    %v1186 = vpop.f32.mrb[0].mxu0
    %v1187 = vadd.f32 %v1039, %v1186
    %1188 = vmatprep.mubr.bf16.mxu0 0
    %1189 = vmatmul.mubr.bf16.gmra.mrb[0].mxu0 %v1084
    %v1190 = vpop.f32.mrb[0].mxu0
    %v1191 = vadd.f32 %v1035, %v1190
    %v1192 = vpop.f32.mrb[0].mxu0
    %v1193 = vadd.f32 %v1039, %v1192
    %v1194 = vpop.f32.mrb[0].mxu0
    %v1195 = vadd.f32 %v1035, %v1194
    %v1196 = vpop.f32.mrb[0].mxu0
    %v1197 = vadd.f32 %v1039, %v1196
    %1198 = vdwg.mxu0
    %v1199 = vpack.c.bf16 %v1125, %v1121
    %v1200 = vpack.c.bf16 %v1127, %v1123
    %v1201 = vpack.c.bf16 %v1135, %v1131
    %v1202 = vpack.c.bf16 %v1137, %v1133
    %v1203 = vpack.c.bf16 %v1145, %v1141
    %v1204 = vpack.c.bf16 %v1147, %v1143
    %v1205 = vpack.c.bf16 %v1155, %v1151
    %v1206 = vpack.c.bf16 %v1157, %v1153
    %v1207 = vpack.c.bf16 %v1165, %v1161
    %v1208 = vpack.c.bf16 %v1167, %v1163
    %v1209 = vpack.c.bf16 %v1175, %v1171
    %v1210 = vpack.c.bf16 %v1177, %v1173
    %v1211 = vpack.c.bf16 %v1185, %v1181
    %v1212 = vpack.c.bf16 %v1187, %v1183
    %v1213 = vpack.c.bf16 %v1195, %v1191
    %v1214 = vpack.c.bf16 %v1197, %v1193
    %v1231 = vunpack.c.l.b16 %v1199
    %v1232 = vunpack.c.l.b16 %v1200
    %v1233 = vunpack.c.h.b16 %v1199
    %v1234 = vunpack.c.h.b16 %v1200
    %v1235 = vunpack.c.l.b16 %v1201
    %v1236 = vunpack.c.l.b16 %v1202
    %v1237 = vunpack.c.h.b16 %v1201
    %v1238 = vunpack.c.h.b16 %v1202
    %v1239 = vunpack.c.l.b16 %v1203
    %v1240 = vunpack.c.l.b16 %v1204
    %v1241 = vunpack.c.h.b16 %v1203
    %v1242 = vunpack.c.h.b16 %v1204
    %v1243 = vunpack.c.l.b16 %v1205
    %v1244 = vunpack.c.l.b16 %v1206
    %v1245 = vunpack.c.h.b16 %v1205
    %v1246 = vunpack.c.h.b16 %v1206
    %v1247 = vunpack.c.l.b16 %v1207
    %v1248 = vunpack.c.l.b16 %v1208
    %v1249 = vunpack.c.h.b16 %v1207
    %v1250 = vunpack.c.h.b16 %v1208
    %v1251 = vunpack.c.l.b16 %v1209
    %v1252 = vunpack.c.l.b16 %v1210
    %v1253 = vunpack.c.h.b16 %v1209
    %v1254 = vunpack.c.h.b16 %v1210
    %v1255 = vunpack.c.l.b16 %v1211
    %v1256 = vunpack.c.l.b16 %v1212
    %v1257 = vunpack.c.h.b16 %v1211
    %v1258 = vunpack.c.h.b16 %v1212
    %v1259 = vunpack.c.l.b16 %v1213
    %v1260 = vunpack.c.l.b16 %v1214
    %v1261 = vunpack.c.h.b16 %v1213
    %v1262 = vunpack.c.h.b16 %v1214
    %v1263 = vpack.c.b16 %v1232, %v1231
    %v1264 = vpack.c.b16 %v1234, %v1233
    %v1265 = vpack.c.b16 %v1236, %v1235
    %v1266 = vpack.c.b16 %v1238, %v1237
    %v1267 = vpack.c.b16 %v1240, %v1239
    %v1268 = vpack.c.b16 %v1242, %v1241
    %v1269 = vpack.c.b16 %v1244, %v1243
    %v1270 = vpack.c.b16 %v1246, %v1245
    %v1271 = vpack.c.b16 %v1248, %v1247
    %v1272 = vpack.c.b16 %v1250, %v1249
    %v1273 = vpack.c.b16 %v1252, %v1251
    %v1274 = vpack.c.b16 %v1254, %v1253
    %v1275 = vpack.c.b16 %v1256, %v1255
    %v1276 = vpack.c.b16 %v1258, %v1257
    %v1277 = vpack.c.b16 %v1260, %v1259
    %v1278 = vpack.c.b16 %v1262, %v1261
    %1295 = vst [vmem:[#allocation2] sm:$0xff] %v1263
    %1296 = vst [vmem:[#allocation2 + $0x8] sm:$0xff] %v1264
    %1297 = vst [vmem:[#allocation2 + $0x10] sm:$0xff] %v1265
    %1298 = vst [vmem:[#allocation2 + $0x18] sm:$0xff] %v1266
    %1299 = vst [vmem:[#allocation2 + $0x20] sm:$0xff] %v1267
    %1300 = vst [vmem:[#allocation2 + $0x28] sm:$0xff] %v1268
    %1301 = vst [vmem:[#allocation2 + $0x30] sm:$0xff] %v1269
    %1302 = vst [vmem:[#allocation2 + $0x38] sm:$0xff] %v1270
    %1303 = vst [vmem:[#allocation2 + $0x40] sm:$0xff] %v1271
    %1304 = vst [vmem:[#allocation2 + $0x48] sm:$0xff] %v1272
    %1305 = vst [vmem:[#allocation2 + $0x50] sm:$0xff] %v1273
    %1306 = vst [vmem:[#allocation2 + $0x58] sm:$0xff] %v1274
    %1307 = vst [vmem:[#allocation2 + $0x60] sm:$0xff] %v1275
    %1308 = vst [vmem:[#allocation2 + $0x68] sm:$0xff] %v1276
    %1309 = vst [vmem:[#allocation2 + $0x70] sm:$0xff] %v1277
    %1310 = vst [vmem:[#allocation2 + $0x78] sm:$0xff] %v1278
    // Predicated region
    $region22: #{tpu_custom_call.1} parent=1 // pred_check
      _
    $region23: #{tpu_custom_call.1} parent=1 // pred_check_branch
      %1312 = sbr.rel (0) target = $region25
    $region24: #{tpu_custom_call.1} parent=1 // pred_region
      %s1314 = ssub.s32 2048, 2048
      %1315 = vsyncadd [#allocation3], %s1314
      %s1316 = sshll.u32 [#allocation2], 4
      %s1317 = int_to_ptr.vmem [resolvable:$true] %s1316
      %1322 = dma.vmem_to_hbm [thread:$0]  %s1317, 2048, %s5, [#allocation3], 128, 128, 8
    $region25: #{tpu_custom_call.1} parent=1 // pred_fallthru
      _
    // Predicated region
    $region26: #{tpu_custom_call.1} parent=1 // pred_check
      _
    $region27: #{tpu_custom_call.1} parent=1 // pred_check_branch
      %1324 = sbr.rel (0) target = $region29
    $region28: #{tpu_custom_call.1} parent=1 // pred_region
      %1325 = dma.done [#allocation3], 2048
    $region29: #{tpu_custom_call.1} parent=1 // pred_fallthru
      _
    %1326 = vsyncpa [#allocation3], 1

</llo_original>
